<compile_context>
chip_gen: v7x
topology: tpu7x:2x2x1
jax: 0.10.0
libtpu: 0.0.40
codegen_flags: <defaults>
</compile_context>

<pallas_src>
import jax
import jax.numpy as jnp
from jax.experimental import pallas as pl
from jax.experimental.pallas import tpu as pltpu

_LANES = 128


def _make_scst_kernel(inv_n):
    """inv_n = 1 / (batch * seq_per_img); baked in as a compile-time constant."""

    def kernel(slab_ref, out_ref):
        # slab_ref: (3, B, S_pad) lane-dense, zero-padded along S.
        #   [0] sampled scores, [1] sampled logprobs, [2] greedy baseline
        #   broadcast along lanes.  Cast to f32 after load (inputs may be bf16;
        #   keep f32 math — v5e's VPU has no bf16 ALU).
        s = slab_ref[0].astype(jnp.float32)    # (B, S_pad)
        lp = slab_ref[1].astype(jnp.float32)   # (B, S_pad)
        g = slab_ref[2].astype(jnp.float32)    # (B, S_pad)

        # Per-element baseline subtraction (no cross-term cancellation):
        #   -lp * (s - g) == lp * (g - s);  pad lanes have lp == 0 -> 0.
        loss_sum = jnp.sum(lp * (g - s))
        score_sum = jnp.sum(s)

        # loss = mean(-lp * (s - g_b)) ;  cur_score = mean(s)
        out_ref[0] = loss_sum * inv_n
        out_ref[1] = score_sum * inv_n

    return kernel


@jax.jit
def scst_reward_loss(sample_scores, greedy_scores, sample_logprobs):
    """
    sample_scores   : (B, S)            -- CIDEr scores of sampled captions
    greedy_scores   : (B,)              -- CIDEr scores of greedy captions
    sample_logprobs : (B*S,) or (B, S)  -- log-probs of sampled captions
    Returns (loss, cur_score), both scalar float32 (forward() / get_score()).
    """
    B, S = sample_scores.shape
    N = B * S

    lp = sample_logprobs.reshape(B, S)
    s = sample_scores

    # Lane-dense padding of the caption axis to a multiple of 128.
    s_pad = (-S) % _LANES
    if s_pad:
        s = jnp.pad(s, ((0, 0), (0, s_pad)))
        lp = jnp.pad(lp, ((0, 0), (0, s_pad)))
    s_padded = S + s_pad

    # Greedy baseline broadcast along lanes; packed into the same slab so the
    # kernel has exactly one (lane-dense, unmasked) input DMA.
    g_b = jnp.broadcast_to(greedy_scores.reshape(B, 1), (B, s_padded))
    slab = jnp.stack(
        [s.astype(jnp.float32), lp.astype(jnp.float32), g_b.astype(jnp.float32)],
        axis=0,
    )  # (3, B, S_pad)

    out = pl.pallas_call(
        _make_scst_kernel(1.0 / float(N)),
        out_shape=jax.ShapeDtypeStruct((2,), jnp.float32),
        in_specs=[pl.BlockSpec(memory_space=pltpu.VMEM)],
        out_specs=pl.BlockSpec(memory_space=pltpu.SMEM),
    )(slab)
    return out[0], out[1]


if __name__ == "__main__":
    key = jax.random.PRNGKey(0)
    B, S = 2, 8          # batch_size, seq_per_img  -> sample_res_size = 16

    k1, k2, k3 = jax.random.split(key, 3)
    # Synthetic CIDEr-like scores in [0, 2) and negative log-probs.
    sample_scores = jax.random.uniform(k1, (B, S), jnp.float32) * 2.0
    greedy_scores = jax.random.uniform(k2, (B,), jnp.float32) * 2.0
    sample_logprobs = -jax.random.uniform(k3, (B * S,), jnp.float32) * 5.0

    loss, cur_score = scst_reward_loss(sample_scores, greedy_scores,
                                       sample_logprobs)
    loss = jax.block_until_ready(loss)
    cur_score = jax.block_until_ready(cur_score)

    # Pure-JAX reference (mirrors the PyTorch forward exactly).
    reward_ref = sample_scores - greedy_scores[:, None]
    loss_ref = jnp.mean(-sample_logprobs.reshape(B, S) * reward_ref)
    score_ref = jnp.mean(sample_scores)
    assert jnp.allclose(loss, loss_ref, atol=1e-5, rtol=1e-5)
    assert jnp.allclose(cur_score, score_ref, atol=1e-5, rtol=1e-5)

    print("KERNEL_OK")
</pallas_src>

<mosaic_0001>
module attributes {stable_mosaic.version = 11 : i64} {
  func.func @kernel(%arg0: memref<3x2x128xf32, #tpu.memory_space<vmem>>, %arg1: memref<2xf32, #tpu.memory_space<smem>>) attributes {dimension_semantics = [], scalar_prefetch = 0 : i64, scratch_operands = 0 : i64, tpu.core_type = #tpu.core_type<tc>} {
    %c0 = arith.constant 0 : index
    %c0_0 = arith.constant 0 : index
    %c0_1 = arith.constant 0 : index
    %0 = vector.load %arg0[%c0, %c0_0, %c0_1] : memref<3x2x128xf32, #tpu.memory_space<vmem>>, vector<1x2x128xf32>
    %1 = vector.shape_cast %0 : vector<1x2x128xf32> to vector<2x128xf32>
    %c1 = arith.constant 1 : index
    %c0_2 = arith.constant 0 : index
    %c0_3 = arith.constant 0 : index
    %2 = vector.load %arg0[%c1, %c0_2, %c0_3] : memref<3x2x128xf32, #tpu.memory_space<vmem>>, vector<1x2x128xf32>
    %3 = vector.shape_cast %2 : vector<1x2x128xf32> to vector<2x128xf32>
    %c2 = arith.constant 2 : index
    %c0_4 = arith.constant 0 : index
    %c0_5 = arith.constant 0 : index
    %4 = vector.load %arg0[%c2, %c0_4, %c0_5] : memref<3x2x128xf32, #tpu.memory_space<vmem>>, vector<1x2x128xf32>
    %5 = vector.shape_cast %4 : vector<1x2x128xf32> to vector<2x128xf32>
    %6 = arith.subf %5, %1 : vector<2x128xf32>
    %7 = arith.mulf %3, %6 : vector<2x128xf32>
    %8 = vector.shape_cast %7 : vector<2x128xf32> to vector<1x2x128xf32>
    %cst = arith.constant dense<0.000000e+00> : vector<1xf32>
    %9 = vector.multi_reduction <add>, %8, %cst [1, 2] : vector<1x2x128xf32> to vector<1xf32>
    %10 = vector.shape_cast %9 : vector<1xf32> to vector<1x1x1xf32>
    %11 = vector.extract %10[0, 0, 0] : f32 from vector<1x1x1xf32>
    %12 = vector.shape_cast %1 : vector<2x128xf32> to vector<1x2x128xf32>
    %cst_6 = arith.constant dense<0.000000e+00> : vector<1xf32>
    %13 = vector.multi_reduction <add>, %12, %cst_6 [1, 2] : vector<1x2x128xf32> to vector<1xf32>
    %14 = vector.shape_cast %13 : vector<1xf32> to vector<1x1x1xf32>
    %15 = vector.extract %14[0, 0, 0] : f32 from vector<1x1x1xf32>
    %cst_7 = arith.constant 6.250000e-02 : f32
    %16 = arith.mulf %11, %cst_7 : f32
    %c0_8 = arith.constant 0 : index
    %17 = memref.load %arg1[%c0_8] : memref<2xf32, #tpu.memory_space<smem>>
    memref.store %16, %arg1[%c0_8] : memref<2xf32, #tpu.memory_space<smem>>
    %cst_9 = arith.constant 6.250000e-02 : f32
    %18 = arith.mulf %15, %cst_9 : f32
    %c1_10 = arith.constant 1 : index
    %19 = memref.load %arg1[%c1_10] : memref<2xf32, #tpu.memory_space<smem>>
    memref.store %18, %arg1[%c1_10] : memref<2xf32, #tpu.memory_space<smem>>
    return
  }
}

</mosaic_0001>

<llo_original>
// kernel: scst_reward_loss.1
$region0: #{scst_reward_loss.1}
  #allocation0 [shape = 'u32[]', space=smem, size = 0x4, offset = 0x4, fixed_abs, tag = 'smem constant byte address 0x4 - core index']
  #allocation1 [shape = 'u32[144,128]{1,0:T(1,128)}', space=vmem, size = 0x12000, scoped, tag = 'internal scratch']
  %s0 = inlined_call_operand.vmem [shape: f32[3,2,128], index: 0, kind: input, shape index: {}]
  %s1 = inlined_call_operand.vmem [shape: f32[2], index: 1, kind: output, shape index: {}]
  %s2 = sld [smem:[#allocation0]]
  $region14: #{scst_reward_loss.1} parent=0
    _
  %s4 = ssub.s32 1, %s2
  %s5 = scalar_select 0, %s4, %s2
  $region1: #{scst_reward_loss.1} parent=0
    #allocation2 [shape = 'u8[512]{0}', space=smem, size = 0x200, scoped, tag = 'output window, operand 0, single buffered']
    #allocation3 [shape = 's32[1]{0}', space=sflag, size = 0x4, scoped, tag = 'scoped memory for scst_reward_loss.1']
    %6 = vsyncpa [#allocation3], 0
    // Predicated region
    $region2: #{scst_reward_loss.1} parent=1 // pred_check
      _
    $region3: #{scst_reward_loss.1} parent=1 // pred_check_branch
      %8 = sbr.rel (0) target = $region5
    $region4: #{scst_reward_loss.1} parent=1 // pred_region
      _
    $region5: #{scst_reward_loss.1} parent=1 // pred_fallthru
      _
    %v9 = vld [vmem:[%s0] sm:$0x3]
    %s10 = scalar_lea.vmem %s0, 2
    %v11 = vld [vmem:[%s10] sm:$0x3]
    %s12 = scalar_lea.vmem %s0, 4
    %v13 = vld [vmem:[%s12] sm:$0x3]
    %v14 = vsub.f32 %v13, %v9
    %v15 = vmul.f32 %v11, %v14
    %vm16 = vcmask 1041408
    %v17 = vsel %vm16, %v15, 0.0
    %18 = vadd.xlane.f32.xlu0 %v17
    %v19 = vpop.xlane.xlu0 %18
    %v20 = vrot.slane %v19, 4
    %v21 = vadd.f32 %v19, %v20
    %v22 = vrot.slane %v21, 2
    %v23 = vadd.f32 %v21, %v22
    %v24 = vrot.slane %v23, 1
    %v25 = vadd.f32 %v23, %v24
    %s26 = vtos %v25
    %v27 = vsel %vm16, %v9, 0.0
    %28 = vadd.xlane.f32.xlu0 %v27
    %v29 = vpop.xlane.xlu0 %28
    %v30 = vrot.slane %v29, 4
    %v31 = vadd.f32 %v29, %v30
    %v32 = vrot.slane %v31, 2
    %v33 = vadd.f32 %v31, %v32
    %v34 = vrot.slane %v33, 1
    %v35 = vadd.f32 %v33, %v34
    %s36 = vtos %v35
    %s37 = smul.f32 %s26, 0.0625
    %s38 = scalar_lea.smem [#allocation2], 0
    %39 = sst [smem:[%s38]] %s37
    %s40 = smul.f32 %s36, 0.0625
    %s41 = scalar_lea.smem [#allocation2], 1
    %42 = sst [smem:[%s41]] %s40
    // Predicated region
    $region6: #{scst_reward_loss.1} parent=1 // pred_check
      _
    $region7: #{scst_reward_loss.1} parent=1 // pred_check_branch
      %44 = sbr.rel (0) target = $region9
    $region8: #{scst_reward_loss.1} parent=1 // pred_region
      %s46 = ssub.s32 16, 16
      %47 = vsyncadd [#allocation3], %s46
      %s49 = sshll.u32 %s1, 4
      %s50 = int_to_ptr.vmem [resolvable:$true] %s49
      %52 = dma.smem_to_vmem [#allocation2], 16, %s50, [#allocation3]
    $region9: #{scst_reward_loss.1} parent=1 // pred_fallthru
      _
    // Predicated region
    $region10: #{scst_reward_loss.1} parent=1 // pred_check
      _
    $region11: #{scst_reward_loss.1} parent=1 // pred_check_branch
      %54 = sbr.rel (0) target = $region13
    $region12: #{scst_reward_loss.1} parent=1 // pred_region
      %55 = dma.done [#allocation3], 16
    $region13: #{scst_reward_loss.1} parent=1 // pred_fallthru
      _
    %56 = sfence
    %57 = vsyncpa [#allocation3], 1

</llo_original>
